<compile_context>
chip_gen: v7x
topology: tpu7x:2x2x1
jax: 0.10.0
libtpu: 0.0.40
codegen_flags: <defaults>
</compile_context>

<pallas_src>
from typing import NamedTuple, Optional

import jax
import jax.numpy as jnp
from jax.experimental import pallas as pl
from jax.experimental.pallas import tpu as pltpu


def _round_up(x: int, m: int) -> int:
    return ((x + m - 1) // m) * m


def _vmem_limit_bytes() -> int:
    """Generation-dependent scoped-VMEM cap (leave headroom on v7x's 64 MiB)."""
    try:
        cap = pltpu.get_tpu_info().vmem_capacity_bytes
    except Exception:
        cap = 64 * 1024 * 1024  # conservative fallback: assume v7x-sized VMEM
    if cap <= 64 * 1024 * 1024:      # v7x: 64 MiB per TensorCore
        return 56 * 1024 * 1024
    return 100 * 1024 * 1024         # v5e / v6e: 128 MiB physical VMEM


# ---------------------------------------------------------------------------
# Kernels
# ---------------------------------------------------------------------------
def _rpl_kernel_f32out(x_ref, w_ref, b_ref, o_ref):
    """f32 output: accumulate directly into the resident output tile."""
    k = pl.program_id(2)
    part = jnp.dot(x_ref[...], w_ref[...], preferred_element_type=jnp.float32)

    @pl.when(k == 0)
    def _init():
        # Bias fused with the first partial product -- no separate fill pass.
        o_ref[...] = b_ref[...] + part

    @pl.when(k != 0)
    def _accum():
        o_ref[...] += part


def _rpl_kernel_acc(x_ref, w_ref, b_ref, o_ref, acc_ref):
    """Narrow output dtype (e.g. bf16): f32 VMEM accumulator, cast at the end."""
    k = pl.program_id(2)
    part = jnp.dot(x_ref[...], w_ref[...], preferred_element_type=jnp.float32)

    @pl.when(k == 0)
    def _init():
        acc_ref[...] = b_ref[...] + part        # bias stays float32

    @pl.when(k != 0)
    def _accum():
        acc_ref[...] += part

    @pl.when(k == pl.num_programs(2) - 1)
    def _finalize():
        o_ref[...] = acc_ref[...].astype(o_ref.dtype)


# ---------------------------------------------------------------------------
# Parameter prep (hoisted out of the forward hot path)
# ---------------------------------------------------------------------------
class RPLParams(NamedTuple):
    wt: jax.Array    # (Kp, Np) pre-transposed, pre-padded weight (lane-dense N)
    b2d: jax.Array   # (1, Np) float32 bias
    n: int           # original out_features
    k: int           # original in_features
    tn: int          # N tile size used for padding
    tk: int          # K tile size used for padding


def prepare_rpl_params(weight, bias=None, *, tn: int = 1024, tk: int = 512,
                       compute_dtype=None) -> RPLParams:
    """One-time weight layout prep: W -> W^T padded to tile multiples.

    weight: (out_features, in_features); bias: (out_features,) or None.
    compute_dtype: optionally cast the weight (e.g. jnp.bfloat16) -- this is a
    numerics-visible change; f32 accumulation is kept in the kernel either way.
    """
    n, k = weight.shape
    if compute_dtype is not None:
        weight = weight.astype(compute_dtype)

    tn_e = min(tn, _round_up(n, 128))
    tk_e = min(tk, _round_up(k, 128))
    np_ = _round_up(n, tn_e)
    kp = _round_up(k, tk_e)

    wt = weight.T                                   # (K, N): lane-dense MXU RHS
    if (kp, np_) != wt.shape:
        wt = jnp.pad(wt, ((0, kp - k), (0, np_ - n)))

    if bias is None:
        b2d = jnp.zeros((1, np_), jnp.float32)
    else:
        b2d = bias.astype(jnp.float32).reshape(1, n)   # keep bias in float32
        if np_ != n:
            b2d = jnp.pad(b2d, ((0, 0), (0, np_ - n)))

    return RPLParams(wt=wt, b2d=b2d, n=n, k=k, tn=tn_e, tk=tk_e)


# ---------------------------------------------------------------------------
# Forward
# ---------------------------------------------------------------------------
def rpl_forward(x, params: RPLParams, *, tm: int = 512, compute_dtype=None):
    """Y = X @ W^T + b using a pre-prepared weight layout."""
    *lead, K = x.shape
    assert K == params.k, (K, params.k)
    out_dtype = x.dtype

    if compute_dtype is not None:
        x = x.astype(compute_dtype)

    M = 1
    for d in lead:
        M *= d
    x2d = x.reshape(M, K)

    wt, b2d, N = params.wt, params.b2d, params.n
    Kp, Np = wt.shape
    tn_e, tk_e = params.tn, params.tk

    sub = 8 if x2d.dtype.itemsize >= 4 else 16        # sublane granularity
    tm_e = min(tm, _round_up(M, sub))
    Mp = _round_up(M, tm_e)

    if Mp != M or Kp != K:
        x2d = jnp.pad(x2d, ((0, Mp - M), (0, Kp - K)))

    grid_m, grid_n, grid_k = Mp // tm_e, Np // tn_e, Kp // tk_e

    # Leading parallel grid axis = the one with more blocks, so both v7x
    # TensorCores are occupied even for small-M (decode-style) calls.
    # K (the reduction axis) stays last, marked "arbitrary".
    if grid_n >= grid_m:
        grid = (grid_n, grid_m, grid_k)
        x_map = lambda j, i, k: (i, k)
        w_map = lambda j, i, k: (k, j)
        b_map = lambda j, i, k: (0, j)
        o_map = lambda j, i, k: (i, j)
    else:
        grid = (grid_m, grid_n, grid_k)
        x_map = lambda i, j, k: (i, k)
        w_map = lambda i, j, k: (k, j)
        b_map = lambda i, j, k: (0, j)
        o_map = lambda i, j, k: (i, j)

    if out_dtype == jnp.float32:
        kernel = _rpl_kernel_f32out
        scratch = []
    else:
        kernel = _rpl_kernel_acc
        scratch = [pltpu.VMEM((tm_e, tn_e), jnp.float32)]

    # Grid-accurate HBM traffic (includes the tile re-read factors).
    out_isize = jnp.dtype(out_dtype).itemsize
    bytes_accessed = (
        Mp * Kp * x2d.dtype.itemsize * grid_n       # X re-read once per N block
        + Kp * Np * wt.dtype.itemsize * grid_m      # W re-read once per M block
        + Np * b2d.dtype.itemsize * grid_m
        + Mp * Np * out_isize
    )

    out2d = pl.pallas_call(
        kernel,
        out_shape=jax.ShapeDtypeStruct((Mp, Np), out_dtype),
        grid_spec=pltpu.PrefetchScalarGridSpec(
            num_scalar_prefetch=0,
            grid=grid,
            in_specs=[
                pl.BlockSpec((tm_e, tk_e), x_map),    # X tile
                pl.BlockSpec((tk_e, tn_e), w_map),    # W^T tile (lane-dense N)
                pl.BlockSpec((1, tn_e), b_map),       # bias (full first dim)
            ],
            out_specs=pl.BlockSpec((tm_e, tn_e), o_map),
            scratch_shapes=scratch,
        ),
        compiler_params=pltpu.CompilerParams(
            dimension_semantics=("parallel", "parallel", "arbitrary"),
            vmem_limit_bytes=_vmem_limit_bytes(),
        ),
        cost_estimate=pl.CostEstimate(
            flops=2 * Mp * Np * Kp,
            transcendentals=0,
            bytes_accessed=bytes_accessed,
        ),
    )(x2d, wt, b2d)

    out2d = out2d[:M, :N]
    return out2d.reshape(*lead, N)


def row_parallel_linear(x, weight, bias=None, *, tm: int = 512, tn: int = 1024,
                        tk: int = 512, compute_dtype=None):
    """Convenience wrapper.  Prefer prepare_rpl_params() + rpl_forward() so the
    weight transpose / padding is done once at init rather than per forward."""
    params = prepare_rpl_params(weight, bias, tn=tn, tk=tk,
                                compute_dtype=compute_dtype)
    return rpl_forward(x, params, tm=tm, compute_dtype=compute_dtype)


def init_row_parallel_linear_params(key, in_features, out_features,
                                    dtype=jnp.float32):
    """xavier_normal_ weight init, zero bias (matches the PyTorch module)."""
    std = (2.0 / (in_features + out_features)) ** 0.5
    weight = std * jax.random.normal(key, (out_features, in_features), dtype=dtype)
    bias = jnp.zeros((out_features,), dtype=dtype)
    return weight, bias


if __name__ == "__main__":
    key = jax.random.PRNGKey(0)
    k_w, k_x, k_w2, k_x2 = jax.random.split(key, 4)

    # Case 1: tile-aligned shapes, pre-prepared weight layout (hot-path form).
    batch, seq = 2, 8
    in_features, out_features = 256, 128
    weight, bias = init_row_parallel_linear_params(k_w, in_features, out_features)
    x = jax.random.normal(k_x, (batch, seq, in_features), dtype=jnp.float32)

    params = prepare_rpl_params(weight, bias)          # one-time layout prep
    fwd = jax.jit(lambda xx: rpl_forward(xx, params))
    y = fwd(x)
    jax.block_until_ready(y)

    y_ref = x @ weight.T + bias
    assert y.shape == (batch, seq, out_features)
    assert jnp.allclose(y, y_ref, atol=1e-4, rtol=1e-4)

    # Case 2: non-aligned shapes through the convenience wrapper (padding path).
    in_f2, out_f2, seq2 = 200, 96, 5
    weight2, bias2 = init_row_parallel_linear_params(k_w2, in_f2, out_f2)
    x2 = jax.random.normal(k_x2, (batch, seq2, in_f2), dtype=jnp.float32)
    y2 = jax.jit(row_parallel_linear)(x2, weight2, bias2)
    jax.block_until_ready(y2)

    y2_ref = x2 @ weight2.T + bias2
    assert y2.shape == (batch, seq2, out_f2)
    assert jnp.allclose(y2, y2_ref, atol=1e-4, rtol=1e-4)

    # Case 3: bf16 activations/weights (numerics-visible opt-in; exercises the
    # f32-accumulator kernel path with a bf16 output).
    x_bf16 = x.astype(jnp.bfloat16)
    params_bf16 = prepare_rpl_params(weight, bias, compute_dtype=jnp.bfloat16)
    y3 = jax.jit(lambda xx: rpl_forward(xx, params_bf16))(x_bf16)
    jax.block_until_ready(y3)
    assert y3.dtype == jnp.bfloat16
    assert jnp.allclose(y3.astype(jnp.float32), y_ref, atol=7e-2, rtol=7e-2)

    print("KERNEL_OK")
</pallas_src>

<mosaic_0001>
module attributes {stable_mosaic.version = 11 : i64} {
  func.func @_rpl_kernel_f32out(%arg0: i32, %arg1: i32, %arg2: i32, %arg3: memref<16x256xf32, #tpu.memory_space<vmem>>, %arg4: memref<256x128xf32, #tpu.memory_space<vmem>>, %arg5: memref<1x128xf32, #tpu.memory_space<vmem>>, %arg6: memref<16x128xf32, #tpu.memory_space<vmem>>) attributes {dimension_semantics = [#tpu.dimension_semantics<parallel>, #tpu.dimension_semantics<parallel>, #tpu.dimension_semantics<arbitrary>], iteration_bounds = array<i64: 1, 1, 1>, scalar_prefetch = 0 : i64, scratch_operands = 0 : i64, tpu.core_type = #tpu.core_type<tc>, window_params = [{transform_indices = @transform_0, window_bounds = array<i64: 16, 256>}, {transform_indices = @transform_1, window_bounds = array<i64: 256, 128>}, {transform_indices = @transform_2, window_bounds = array<i64: 1, 128>}, {transform_indices = @transform_3, window_bounds = array<i64: 16, 128>}]} {
    %c0 = arith.constant 0 : index
    %c0_0 = arith.constant 0 : index
    %0 = vector.load %arg3[%c0, %c0_0] : memref<16x256xf32, #tpu.memory_space<vmem>>, vector<16x256xf32>
    %c0_1 = arith.constant 0 : index
    %c0_2 = arith.constant 0 : index
    %1 = vector.load %arg4[%c0_1, %c0_2] : memref<256x128xf32, #tpu.memory_space<vmem>>, vector<256x128xf32>
    %cst = arith.constant dense<0.000000e+00> : vector<16x128xf32>
    %2 = tpu.matmul %0, %1, %cst {dimension_numbers = #tpu.dot_dimension_numbers<[1], [0], [0], [1], [0, 0, 1, 1], [], []>} : vector<16x256xf32>, vector<256x128xf32>, vector<16x128xf32> -> vector<16x128xf32>
    %c0_i32 = arith.constant 0 : i32
    %3 = arith.cmpi eq, %arg2, %c0_i32 : i32
    %4 = arith.extui %3 : i1 to i32
    %c0_i32_3 = arith.constant 0 : i32
    %5 = arith.cmpi ne, %4, %c0_i32_3 : i32
    scf.if %5 {
      %c0_6 = arith.constant 0 : index
      %c0_7 = arith.constant 0 : index
      %9 = vector.load %arg5[%c0_6, %c0_7] : memref<1x128xf32, #tpu.memory_space<vmem>>, vector<1x128xf32>
      %10 = vector.broadcast %9 : vector<1x128xf32> to vector<16x128xf32>
      %11 = arith.addf %10, %2 : vector<16x128xf32>
      %c0_8 = arith.constant 0 : index
      %c0_9 = arith.constant 0 : index
      %12 = vector.load %arg6[%c0_8, %c0_9] : memref<16x128xf32, #tpu.memory_space<vmem>>, vector<16x128xf32>
      tpu.vector_store %arg6[%c0_8, %c0_9], %11 {strides = array<i32>} : memref<16x128xf32, #tpu.memory_space<vmem>>, vector<16x128xf32>,
    } else {
    }
    %c0_i32_4 = arith.constant 0 : i32
    %6 = arith.cmpi ne, %arg2, %c0_i32_4 : i32
    %7 = arith.extui %6 : i1 to i32
    %c0_i32_5 = arith.constant 0 : i32
    %8 = arith.cmpi ne, %7, %c0_i32_5 : i32
    scf.if %8 {
      %c0_6 = arith.constant 0 : index
      %c0_7 = arith.constant 0 : index
      %9 = vector.load %arg6[%c0_6, %c0_7] : memref<16x128xf32, #tpu.memory_space<vmem>>, vector<16x128xf32>
      %10 = arith.addf %9, %2 : vector<16x128xf32>
      %c0_8 = arith.constant 0 : index
      %c0_9 = arith.constant 0 : index
      %11 = vector.load %arg6[%c0_8, %c0_9] : memref<16x128xf32, #tpu.memory_space<vmem>>, vector<16x128xf32>
      tpu.vector_store %arg6[%c0_8, %c0_9], %10 {strides = array<i32>} : memref<16x128xf32, #tpu.memory_space<vmem>>, vector<16x128xf32>,
    } else {
    }
    return
  }
  func.func @transform_0(%arg0: i32, %arg1: i32, %arg2: i32) -> (i32, i32) {
    %c0_i32 = arith.constant 0 : i32
    return %arg1, %arg2 : i32, i32
  }
  func.func @transform_1(%arg0: i32, %arg1: i32, %arg2: i32) -> (i32, i32) {
    %c0_i32 = arith.constant 0 : i32
    return %arg2, %arg0 : i32, i32
  }
  func.func @transform_2(%arg0: i32, %arg1: i32, %arg2: i32) -> (i32, i32) {
    %c0_i32 = arith.constant 0 : i32
    %c0_i32_0 = arith.constant 0 : i32
    return %c0_i32, %arg0 : i32, i32
  }
  func.func @transform_3(%arg0: i32, %arg1: i32, %arg2: i32) -> (i32, i32) {
    %c0_i32 = arith.constant 0 : i32
    return %arg1, %arg0 : i32, i32
  }
}

</mosaic_0001>

<llo_original>
// kernel: _lambda_.1
$region0: #{_lambda_.1}
  #allocation0 [shape = 'u32[]', space=smem, size = 0x4, offset = 0x4, fixed_abs, tag = 'smem constant byte address 0x4 - core index']
  #allocation1 [shape = 'u32[144,128]{1,0:T(1,128)}', space=vmem, size = 0x12000, scoped, tag = 'internal scratch']
  %s0 = inlined_call_operand.hbm [shape: f32[16,256], index: 0, kind: input, shape index: {}]
  %s1 = inlined_call_operand.hbm [shape: f32[256,128], index: 1, kind: input, shape index: {}]
  %s2 = inlined_call_operand.vmem [shape: f32[1,128], index: 2, kind: input, shape index: {}]
  %s3 = inlined_call_operand.hbm [shape: f32[16,128], index: 3, kind: output, shape index: {}]
  %s4 = sld [smem:[#allocation0]]
  $region38: #{_lambda_.1} parent=0
    _
  %s6 = ssub.s32 1, %s4
  %s7 = scalar_select 0, %s6, %s4
  $region1: #{_lambda_.1} parent=0
    #allocation2 [shape = 'u8[16384]{0}', space=vmem, size = 0x4000, scoped, tag = 'input window, operand 0, single buffered']
    #allocation3 [shape = 's32[1]{0}', space=sflag, size = 0x4, scoped, tag = 'scoped memory for _lambda_.1']
    #allocation4 [shape = 's32[1]{0}', space=sflag, size = 0x4, scoped, tag = 'scoped memory for _lambda_.1']
    #allocation5 [shape = 'u8[131072]{0}', space=vmem, size = 0x20000, scoped, tag = 'input window, operand 1, single buffered']
    #allocation6 [shape = 's32[1]{0}', space=sflag, size = 0x4, scoped, tag = 'scoped memory for _lambda_.1']
    #allocation7 [shape = 'u8[8192]{0}', space=vmem, size = 0x2000, scoped, tag = 'output window, operand 0, single buffered']
    %8 = vsyncpa [#allocation3], 0
    %9 = vsyncpa [#allocation6], 0
    %10 = vsyncpa [#allocation4], 0
    // Predicated region
    $region2: #{_lambda_.1} parent=1 // pred_check
      _
    $region3: #{_lambda_.1} parent=1 // pred_check_branch
      %12 = sbr.rel (0) target = $region5
    $region4: #{_lambda_.1} parent=1 // pred_region
      %s14 = ssub.s32 512, 512
      %15 = vsyncadd [#allocation3], %s14
      %s16 = sshll.u32 [#allocation2], 4
      %s17 = int_to_ptr.vmem [resolvable:$true] %s16
      %22 = dma.hbm_to_vmem [thread:$0]  %s0, 512, %s17, [#allocation3], 256, 256, 16
    $region5: #{_lambda_.1} parent=1 // pred_fallthru
      _
    // Predicated region
    $region6: #{_lambda_.1} parent=1 // pred_check
      _
    $region7: #{_lambda_.1} parent=1 // pred_check_branch
      %24 = sbr.rel (0) target = $region9
    $region8: #{_lambda_.1} parent=1 // pred_region
      %s26 = ssub.s32 4096, 4096
      %27 = vsyncadd [#allocation6], %s26
      %s28 = sshll.u32 [#allocation5], 4
      %s29 = int_to_ptr.vmem [resolvable:$true] %s28
      %34 = dma.hbm_to_vmem [thread:$0]  %s1, 4096, %s29, [#allocation6], 128, 128, 8
    $region9: #{_lambda_.1} parent=1 // pred_fallthru
      _
    // Predicated region
    $region10: #{_lambda_.1} parent=1 // pred_check
      _
    $region11: #{_lambda_.1} parent=1 // pred_check_branch
      %36 = sbr.rel (0) target = $region13
    $region12: #{_lambda_.1} parent=1 // pred_region
      _
    $region13: #{_lambda_.1} parent=1 // pred_fallthru
      _
    // Predicated region
    $region14: #{_lambda_.1} parent=1 // pred_check
      _
    $region15: #{_lambda_.1} parent=1 // pred_check_branch
      %38 = sbr.rel (0) target = $region17
    $region16: #{_lambda_.1} parent=1 // pred_region
      %39 = dma.done [#allocation3], 512
    $region17: #{_lambda_.1} parent=1 // pred_fallthru
      _
    // Predicated region
    $region18: #{_lambda_.1} parent=1 // pred_check
      _
    $region19: #{_lambda_.1} parent=1 // pred_check_branch
      %41 = sbr.rel (0) target = $region21
    $region20: #{_lambda_.1} parent=1 // pred_region
      %42 = dma.done [#allocation6], 4096
    $region21: #{_lambda_.1} parent=1 // pred_fallthru
      _
    %v43 = vld [vmem:[#allocation2] sm:$0xff]
    %v44 = vld [vmem:[#allocation2 + $0x8] sm:$0xff]
    %v45 = vld [vmem:[#allocation2 + $0x10] sm:$0xff]
    %v46 = vld [vmem:[#allocation2 + $0x18] sm:$0xff]
    %v47 = vld [vmem:[#allocation5] sm:$0xff]
    %v48 = vld [vmem:[#allocation5 + $0x8] sm:$0xff]
    %v49 = vld [vmem:[#allocation5 + $0x10] sm:$0xff]
    %v50 = vld [vmem:[#allocation5 + $0x18] sm:$0xff]
    %v51 = vld [vmem:[#allocation5 + $0x20] sm:$0xff]
    %v52 = vld [vmem:[#allocation5 + $0x28] sm:$0xff]
    %v53 = vld [vmem:[#allocation5 + $0x30] sm:$0xff]
    %v54 = vld [vmem:[#allocation5 + $0x38] sm:$0xff]
    %v55 = vld [vmem:[#allocation5 + $0x40] sm:$0xff]
    %v56 = vld [vmem:[#allocation5 + $0x48] sm:$0xff]
    %v57 = vld [vmem:[#allocation5 + $0x50] sm:$0xff]
    %v58 = vld [vmem:[#allocation5 + $0x58] sm:$0xff]
    %v59 = vld [vmem:[#allocation5 + $0x60] sm:$0xff]
    %v60 = vld [vmem:[#allocation5 + $0x68] sm:$0xff]
    %v61 = vld [vmem:[#allocation5 + $0x70] sm:$0xff]
    %v62 = vld [vmem:[#allocation5 + $0x78] sm:$0xff]
    %v63 = vld [vmem:[#allocation5 + $0x80] sm:$0xff]
    %v64 = vld [vmem:[#allocation5 + $0x88] sm:$0xff]
    %v65 = vld [vmem:[#allocation5 + $0x90] sm:$0xff]
    %v66 = vld [vmem:[#allocation5 + $0x98] sm:$0xff]
    %v67 = vld [vmem:[#allocation5 + $0xa0] sm:$0xff]
    %v68 = vld [vmem:[#allocation5 + $0xa8] sm:$0xff]
    %v69 = vld [vmem:[#allocation5 + $0xb0] sm:$0xff]
    %v70 = vld [vmem:[#allocation5 + $0xb8] sm:$0xff]
    %v71 = vld [vmem:[#allocation5 + $0xc0] sm:$0xff]
    %v72 = vld [vmem:[#allocation5 + $0xc8] sm:$0xff]
    %v73 = vld [vmem:[#allocation5 + $0xd0] sm:$0xff]
    %v74 = vld [vmem:[#allocation5 + $0xd8] sm:$0xff]
    %v75 = vld [vmem:[#allocation5 + $0xe0] sm:$0xff]
    %v76 = vld [vmem:[#allocation5 + $0xe8] sm:$0xff]
    %v77 = vld [vmem:[#allocation5 + $0xf0] sm:$0xff]
    %v78 = vld [vmem:[#allocation5 + $0xf8] sm:$0xff]
    %79 = vmatprep.subr.mxu0 0.0
    %80 = vmatpush1.msra.mxu0 %v47
    %81 = vmatprep.subr.mxu0 0.0
    %82 = vmatpush1.msra.mxu0 %v48
    %83 = vmatprep.subr.mxu0 0.0
    %84 = vmatpush1.msra.mxu0 %v49
    %85 = vmatprep.subr.mxu0 0.0
    %86 = vmatpush1.msra.mxu0 %v50
    %87 = vmatprep.subr.mxu0 0.0
    %88 = vmatpush1.msra.mxu0 %v51
    %89 = vmatprep.subr.mxu0 0.0
    %90 = vmatpush1.msra.mxu0 %v52
    %91 = vmatprep.subr.mxu0 0.0
    %92 = vmatpush1.msra.mxu0 %v53
    %93 = vmatprep.subr.mxu0 0.0
    %94 = vmatpush1.msra.mxu0 %v54
    %95 = vmatprep.subr.mxu0 0.0
    %96 = vmatpush1.msra.mxu0 %v55
    %97 = vmatprep.subr.mxu0 0.0
    %98 = vmatpush1.msra.mxu0 %v56
    %99 = vmatprep.subr.mxu0 0.0
    %100 = vmatpush1.msra.mxu0 %v57
    %101 = vmatprep.subr.mxu0 0.0
    %102 = vmatpush1.msra.mxu0 %v58
    %103 = vmatprep.subr.mxu0 0.0
    %104 = vmatpush1.msra.mxu0 %v59
    %105 = vmatprep.subr.mxu0 0.0
    %106 = vmatpush1.msra.mxu0 %v60
    %107 = vmatprep.subr.mxu0 0.0
    %108 = vmatpush1.msra.mxu0 %v61
    %109 = vmatprep.subr.mxu0 0.0
    %110 = vmatpush1.msra.mxu0 %v62
    %111 = vmatprep.subr.mxu0 0.0
    %112 = vmatpush1.msra.mxu0 %v63
    %113 = vmatprep.subr.mxu0 0.0
    %114 = vmatpush1.msra.mxu0 %v64
    %115 = vmatprep.subr.mxu0 0.0
    %116 = vmatpush1.msra.mxu0 %v65
    %117 = vmatprep.subr.mxu0 0.0
    %118 = vmatpush1.msra.mxu0 %v66
    %119 = vmatprep.subr.mxu0 0.0
    %120 = vmatpush1.msra.mxu0 %v67
    %121 = vmatprep.subr.mxu0 0.0
    %122 = vmatpush1.msra.mxu0 %v68
    %123 = vmatprep.subr.mxu0 0.0
    %124 = vmatpush1.msra.mxu0 %v69
    %125 = vmatprep.subr.mxu0 0.0
    %126 = vmatpush1.msra.mxu0 %v70
    %127 = vmatprep.subr.mxu0 0.0
    %128 = vmatpush1.msra.mxu0 %v71
    %129 = vmatprep.subr.mxu0 0.0
    %130 = vmatpush1.msra.mxu0 %v72
    %131 = vmatprep.subr.mxu0 0.0
    %132 = vmatpush1.msra.mxu0 %v73
    %133 = vmatprep.subr.mxu0 0.0
    %134 = vmatpush1.msra.mxu0 %v74
    %135 = vmatprep.subr.mxu0 0.0
    %136 = vmatpush1.msra.mxu0 %v75
    %137 = vmatprep.subr.mxu0 0.0
    %138 = vmatpush1.msra.mxu0 %v76
    %139 = vmatprep.subr.mxu0 0.0
    %140 = vmatpush1.msra.mxu0 %v77
    %141 = vmatprep.subr.mxu0 0.0
    %142 = vmatpush1.msra.mxu0 %v78
    %143 = vmatprep.mubr.f32.mxu0 %v44
    %144 = vmatmul.mubr.f32.gmra.mrb[0].mxu0 %v43
    %v145 = vpop.f32.mrb[0].mxu0
    %v146 = vadd.f32 0.0, %v145
    %v147 = vpop.f32.mrb[0].mxu0
    %148 = vmatprep.mubr.f32.mxu0 %v46
    %149 = vmatmul.mubr.f32.gmra.mrb[0].mxu0 %v45
    %v150 = vpop.f32.mrb[0].mxu0
    %v151 = vadd.f32 0.0, %v150
    %v152 = vpop.f32.mrb[0].mxu0
    %153 = vdwg.mxu0
    %p154 = scmp.eq.s32.totalorder 0, 0
    // Predicated region
    $region22: #{_lambda_.1} parent=1 // pred_check
      %p155 = pneg %p154
    $region23: #{_lambda_.1} parent=1 // pred_check_branch
      %157 = sbr.rel (%p155) target = $region25
    $region24: #{_lambda_.1} parent=1 // pred_region
      %v158 = vld [vmem:[%s2] sm:$0x1]
      %v160 = vlaneseq
      %v161 = vshrl.u32 %v160, 7
      %v162 = vsub.s32 0, %v161
      %v163 = vrot.slane %v158, %v162
      %v165 = vadd.f32 %v163, %v146
      %v166 = vadd.f32 %v163, %v151
      %167 = vst [vmem:[#allocation7] sm:$0xff] %v165
      %168 = vst [vmem:[#allocation7 + $0x8] sm:$0xff] %v166
    $region25: #{_lambda_.1} parent=1 // pred_fallthru
      _
    %p169 = scmp.ne.s32.totalorder 0, 0
    // Predicated region
    $region26: #{_lambda_.1} parent=1 // pred_check
      %p170 = pneg %p169
    $region27: #{_lambda_.1} parent=1 // pred_check_branch
      %172 = sbr.rel (%p170) target = $region29
    $region28: #{_lambda_.1} parent=1 // pred_region
      %v173 = vld [vmem:[#allocation7] sm:$0xff]
      %v174 = vld [vmem:[#allocation7 + $0x8] sm:$0xff]
      %v175 = vadd.f32 %v173, %v146
      %v176 = vadd.f32 %v174, %v151
      %177 = vst [vmem:[#allocation7] sm:$0xff] %v175
      %178 = vst [vmem:[#allocation7 + $0x8] sm:$0xff] %v176
    $region29: #{_lambda_.1} parent=1 // pred_fallthru
      _
    // Predicated region
    $region30: #{_lambda_.1} parent=1 // pred_check
      _
    $region31: #{_lambda_.1} parent=1 // pred_check_branch
      %180 = sbr.rel (0) target = $region33
    $region32: #{_lambda_.1} parent=1 // pred_region
      %s182 = ssub.s32 256, 256
      %183 = vsyncadd [#allocation4], %s182
      %s184 = sshll.u32 [#allocation7], 4
      %s185 = int_to_ptr.vmem [resolvable:$true] %s184
      %190 = dma.vmem_to_hbm [thread:$0]  %s185, 256, %s3, [#allocation4], 128, 128, 8
    $region33: #{_lambda_.1} parent=1 // pred_fallthru
      _
    // Predicated region
    $region34: #{_lambda_.1} parent=1 // pred_check
      _
    $region35: #{_lambda_.1} parent=1 // pred_check_branch
      %192 = sbr.rel (0) target = $region37
    $region36: #{_lambda_.1} parent=1 // pred_region
      %193 = dma.done [#allocation4], 256
    $region37: #{_lambda_.1} parent=1 // pred_fallthru
      _
    %194 = vsyncpa [#allocation3], 1
    %195 = vsyncpa [#allocation6], 1
    %196 = vsyncpa [#allocation4], 1

</llo_original>
